<compile_context>
chip_gen: v7x
topology: tpu7x:2x2x1
jax: 0.10.0
libtpu: 0.0.40
codegen_flags: <defaults>
</compile_context>

<pallas_src>
import numpy as np
import jax
import jax.numpy as jnp
from jax.experimental import pallas as pl
from jax.experimental.pallas import tpu as pltpu


def conv_dims(L):
    # sum over kernel sizes i=1..L of (out_channels=i) * (out_positions=L-i+1)
    return sum(i * (L - i + 1) for i in range(1, L + 1))


def _round_up(n, m):
    return ((n + m - 1) // m) * m


# ---------------------------------------------------------------------------
# Pallas kernel: one MXU matmul (bf16 x bf16 -> f32 acc) + VPU bias add.
#   x_ref : (tb, K)        bf16 flattened input rows (K = C*L)
#   m_ref : (K, out_len)   bf16 assembled conv-bank matrix (VMEM-resident)
#   b_ref : (1, out_len)   f32 folded conv biases        (VMEM-resident)
#   o_ref : (tb, out_len)  f32 output (full-width block -> no wrapper slice)
# ---------------------------------------------------------------------------
def nconv_kernel(x_ref, m_ref, b_ref, o_ref):
    acc = jnp.dot(x_ref[...], m_ref[...], preferred_element_type=jnp.float32)
    o_ref[...] = acc + b_ref[...]


# ---------------------------------------------------------------------------
# Parameter construction (deterministic; matches PyTorch Conv1d shapes/init).
# ---------------------------------------------------------------------------
def init_params(key, C, L):
    out_len = conv_dims(L)
    keys = jax.random.split(key, 2 * L)

    conv_ws, conv_bs = [], []
    for i in range(1, L + 1):
        bound = 1.0 / np.sqrt(C * i)
        conv_ws.append(np.asarray(
            jax.random.uniform(keys[2 * (i - 1)], (i, C, i), jnp.float32,
                               -bound, bound)))
        conv_bs.append(np.asarray(
            jax.random.uniform(keys[2 * (i - 1) + 1], (i,), jnp.float32,
                               -bound, bound)))

    # ---- assemble the conv bank into a single (C*L, out_len) matrix ----
    # column index for (kernel size i, out channel o, position t):
    #   offset_i + o*(L-i+1) + t   (exactly torch's .view(B, -1) + cat order)
    # row index: c*L + p  (matches x.reshape(B, C*L) row-major order)
    M = np.zeros((C * L, out_len), dtype=np.float32)
    bias = np.zeros((out_len,), dtype=np.float32)
    off = 0
    for i in range(1, L + 1):
        Ti = L - i + 1
        Wt = np.transpose(conv_ws[i - 1], (1, 2, 0))      # (c, k, o)
        blk = np.zeros((C, L, i, Ti), dtype=np.float32)
        for t in range(Ti):
            blk[:, t:t + i, :, t] = Wt                     # rows (c, t+k), cols (o, t)
        M[:, off:off + i * Ti] = blk.reshape(C * L, i * Ti)
        bias[off:off + i * Ti] = np.repeat(conv_bs[i - 1], Ti)
        off += i * Ti

    # bf16 weights (MXU-native on all generations), f32 bias (post-acc add).
    # K = C*L = 32 is already a multiple of the bf16 sublane-pack (16).
    M_bf16 = jnp.asarray(M, dtype=jnp.bfloat16)
    bias_f32 = jnp.asarray(bias, dtype=jnp.float32).reshape(1, out_len)

    raw = dict(conv_ws=conv_ws, conv_bs=conv_bs)
    return M_bf16, bias_f32, out_len, raw


# ---------------------------------------------------------------------------
# Wrapper around pallas_call.
# ---------------------------------------------------------------------------
def _pick_batch_tile(B):
    if B <= 8:
        return B                                   # full-dim block, grid=(1,)
    # >=2 grid steps so the "parallel" axis can shard across 2 TCs (v7x);
    # tile capped at 512 to stay well past the per-step-overhead knee while
    # keeping VMEM footprint tiny on every generation.
    return min(512, _round_up(pl.cdiv(B, 2), 8))


def nconv_forward(x, M, bias, out_len):
    B, C, L = x.shape
    K = C * L

    # (B, C, L) -> (B, C*L) row-major (same memory order as torch), bf16 cast.
    x_flat = x.reshape(B, K).astype(jnp.bfloat16)

    tb = _pick_batch_tile(B)
    grid = (pl.cdiv(B, tb),)

    cost = pl.CostEstimate(
        flops=2 * B * K * out_len,
        transcendentals=0,
        bytes_accessed=(B * K * 2            # x  (bf16)
                        + K * out_len * 2    # M  (bf16)
                        + out_len * 4        # bias (f32)
                        + B * out_len * 4))  # out (f32)

    out = pl.pallas_call(
        nconv_kernel,
        out_shape=jax.ShapeDtypeStruct((B, out_len), jnp.float32),
        grid_spec=pltpu.PrefetchScalarGridSpec(
            num_scalar_prefetch=0,
            grid=grid,
            in_specs=[pl.BlockSpec((tb, K), lambda i: (i, 0)),
                      pl.BlockSpec((K, out_len), lambda i: (0, 0)),   # resident
                      pl.BlockSpec((1, out_len), lambda i: (0, 0))],  # resident
            out_specs=pl.BlockSpec((tb, out_len), lambda i: (i, 0))),
        compiler_params=pltpu.CompilerParams(
            dimension_semantics=("parallel",)),
        cost_estimate=cost,
    )(x_flat, M, bias)

    # PyTorch NConv output layout: (B, 1, out_len) — unit-dim insert only.
    return out.reshape(B, 1, out_len)


# ---------------------------------------------------------------------------
# Pure-numpy reference (direct loops over the PyTorch semantics, f32).
# ---------------------------------------------------------------------------
def reference_forward(x, raw, C, L):
    x = np.asarray(x, dtype=np.float32)
    B = x.shape[0]
    outs = []
    for i in range(1, L + 1):
        Wi, bi = raw["conv_ws"][i - 1], raw["conv_bs"][i - 1]
        Ti = L - i + 1
        o = np.zeros((B, i, Ti), dtype=np.float32)
        for t in range(Ti):
            patch = x[:, :, t:t + i]                       # (B, C, i)
            o[:, :, t] = np.einsum("bck,ock->bo", patch, Wi) + bi
        outs.append(o.reshape(B, -1))
    return np.concatenate(outs, axis=1)[:, None, :]        # (B, 1, out_len)


if __name__ == "__main__":
    B, C, L = 2, 4, 8          # input_shape = (4, 8), batch = 2

    key = jax.random.PRNGKey(0)
    kx, kp = jax.random.split(key)
    x = jax.random.normal(kx, (B, C, L), dtype=jnp.float32)

    M, bias, out_len, raw = init_params(kp, C, L)

    out = jax.block_until_ready(nconv_forward(x, M, bias, out_len))

    ref = reference_forward(np.asarray(x), raw, C, L)
    assert out.shape == (B, 1, out_len), out.shape
    # bf16 operands / f32 accumulation: ~0.4% relative rounding is expected.
    assert np.allclose(np.asarray(out), ref, atol=2e-2, rtol=2e-2), \
        "mismatch vs reference"

    print("KERNEL_OK")
</pallas_src>

<mosaic_0001>
module attributes {stable_mosaic.version = 11 : i64} {
  func.func @nconv_kernel(%arg0: i32, %arg1: memref<2x32xbf16, #tpu.memory_space<vmem>>, %arg2: memref<32x120xbf16, #tpu.memory_space<vmem>>, %arg3: memref<1x120xf32, #tpu.memory_space<vmem>>, %arg4: memref<2x120xf32, #tpu.memory_space<vmem>>) attributes {dimension_semantics = [#tpu.dimension_semantics<parallel>], iteration_bounds = array<i64: 1>, scalar_prefetch = 0 : i64, scratch_operands = 0 : i64, tpu.core_type = #tpu.core_type<tc>, window_params = [{transform_indices = @transform_0, window_bounds = array<i64: 2, 32>}, {pipeline_mode = #tpu.pipeline_mode<synchronous>, transform_indices = @transform_1, window_bounds = array<i64: 32, 120>}, {pipeline_mode = #tpu.pipeline_mode<synchronous>, transform_indices = @transform_2, window_bounds = array<i64: 1, 120>}, {transform_indices = @transform_3, window_bounds = array<i64: 2, 120>}]} {
    %c0 = arith.constant 0 : index
    %c0_0 = arith.constant 0 : index
    %0 = vector.load %arg1[%c0, %c0_0] : memref<2x32xbf16, #tpu.memory_space<vmem>>, vector<2x32xbf16>
    %c0_1 = arith.constant 0 : index
    %c0_2 = arith.constant 0 : index
    %1 = vector.load %arg2[%c0_1, %c0_2] : memref<32x120xbf16, #tpu.memory_space<vmem>>, vector<32x120xbf16>
    %cst = arith.constant dense<0.000000e+00> : vector<2x120xf32>
    %2 = tpu.matmul %0, %1, %cst {dimension_numbers = #tpu.dot_dimension_numbers<[1], [0], [0], [1], [0, 0, 1, 1], [], []>} : vector<2x32xbf16>, vector<32x120xbf16>, vector<2x120xf32> -> vector<2x120xf32>
    %c0_3 = arith.constant 0 : index
    %c0_4 = arith.constant 0 : index
    %3 = vector.load %arg3[%c0_3, %c0_4] : memref<1x120xf32, #tpu.memory_space<vmem>>, vector<1x120xf32>
    %4 = vector.broadcast %3 : vector<1x120xf32> to vector<2x120xf32>
    %5 = arith.addf %2, %4 : vector<2x120xf32>
    %c0_5 = arith.constant 0 : index
    %c0_6 = arith.constant 0 : index
    %6 = vector.load %arg4[%c0_5, %c0_6] : memref<2x120xf32, #tpu.memory_space<vmem>>, vector<2x120xf32>
    tpu.vector_store %arg4[%c0_5, %c0_6], %5 {strides = array<i32>} : memref<2x120xf32, #tpu.memory_space<vmem>>, vector<2x120xf32>,
    return
  }
  func.func @transform_0(%arg0: i32) -> (i32, i32) {
    %c0_i32 = arith.constant 0 : i32
    %c0_i32_0 = arith.constant 0 : i32
    return %arg0, %c0_i32 : i32, i32
  }
  func.func @transform_1(%arg0: i32) -> (i32, i32) {
    %c0_i32 = arith.constant 0 : i32
    %c0_i32_0 = arith.constant 0 : i32
    %c0_i32_1 = arith.constant 0 : i32
    return %c0_i32, %c0_i32_0 : i32, i32
  }
  func.func @transform_2(%arg0: i32) -> (i32, i32) {
    %c0_i32 = arith.constant 0 : i32
    %c0_i32_0 = arith.constant 0 : i32
    %c0_i32_1 = arith.constant 0 : i32
    return %c0_i32, %c0_i32_0 : i32, i32
  }
  func.func @transform_3(%arg0: i32) -> (i32, i32) {
    %c0_i32 = arith.constant 0 : i32
    %c0_i32_0 = arith.constant 0 : i32
    return %arg0, %c0_i32 : i32, i32
  }
}

</mosaic_0001>

<llo_original>
// kernel: tpu_custom_call.1
$region0: #{tpu_custom_call.1}
  #allocation0 [shape = 'u32[]', space=smem, size = 0x4, offset = 0x4, fixed_abs, tag = 'smem constant byte address 0x4 - core index']
  #allocation1 [shape = 'u32[144,128]{1,0:T(1,128)}', space=vmem, size = 0x12000, scoped, tag = 'internal scratch']
  %s0 = inlined_call_operand.hbm [shape: bf16[2,32], index: 0, kind: input, shape index: {}]
  %s1 = inlined_call_operand.hbm [shape: bf16[32,120], index: 1, kind: input, shape index: {}]
  %s2 = inlined_call_operand.vmem [shape: f32[1,120], index: 2, kind: input, shape index: {}]
  %s3 = inlined_call_operand.hbm [shape: f32[2,120], index: 3, kind: output, shape index: {}]
  %s4 = sld [smem:[#allocation0]]
  $region30: #{tpu_custom_call.1} parent=0
    _
  %s6 = ssub.s32 1, %s4
  %s7 = scalar_select 0, %s6, %s4
  $region1: #{tpu_custom_call.1} parent=0
    #allocation2 [shape = 'u8[512]{0}', space=vmem, size = 0x400, scoped, tag = 'input window, operand 0, single buffered']
    #allocation3 [shape = 's32[1]{0}', space=sflag, size = 0x4, scoped, tag = 'scoped memory for tpu_custom_call.1']
    #allocation4 [shape = 's32[1]{0}', space=sflag, size = 0x4, scoped, tag = 'scoped memory for tpu_custom_call.1']
    #allocation5 [shape = 'u8[8192]{0}', space=vmem, size = 0x2000, scoped, tag = 'input window, operand 1, single buffered']
    #allocation6 [shape = 's32[1]{0}', space=sflag, size = 0x4, scoped, tag = 'scoped memory for tpu_custom_call.1']
    #allocation7 [shape = 'u8[1024]{0}', space=vmem, size = 0x400, scoped, tag = 'output window, operand 0, single buffered']
    %8 = vsyncpa [#allocation3], 0
    %9 = vsyncpa [#allocation6], 0
    %10 = vsyncpa [#allocation4], 0
    // Predicated region
    $region2: #{tpu_custom_call.1} parent=1 // pred_check
      _
    $region3: #{tpu_custom_call.1} parent=1 // pred_check_branch
      %12 = sbr.rel (0) target = $region5
    $region4: #{tpu_custom_call.1} parent=1 // pred_region
      %s14 = ssub.s32 16, 16
      %15 = vsyncadd [#allocation3], %s14
      %s17 = sshll.u32 [#allocation2], 4
      %s18 = int_to_ptr.vmem [resolvable:$true] %s17
      %20 = dma.hbm_to_vmem [thread:$0]  %s0, 16, %s18, [#allocation3]
    $region5: #{tpu_custom_call.1} parent=1 // pred_fallthru
      _
    // Predicated region
    $region6: #{tpu_custom_call.1} parent=1 // pred_check
      _
    $region7: #{tpu_custom_call.1} parent=1 // pred_check_branch
      %22 = sbr.rel (0) target = $region9
    $region8: #{tpu_custom_call.1} parent=1 // pred_region
      %s24 = ssub.s32 256, 256
      %25 = vsyncadd [#allocation6], %s24
      %s26 = sshll.u32 [#allocation5], 4
      %s27 = int_to_ptr.vmem [resolvable:$true] %s26
      %32 = dma.hbm_to_vmem [thread:$0]  %s1, 256, %s27, [#allocation6], 64, 64, 4
    $region9: #{tpu_custom_call.1} parent=1 // pred_fallthru
      _
    // Predicated region
    $region10: #{tpu_custom_call.1} parent=1 // pred_check
      _
    $region11: #{tpu_custom_call.1} parent=1 // pred_check_branch
      %34 = sbr.rel (0) target = $region13
    $region12: #{tpu_custom_call.1} parent=1 // pred_region
      _
    $region13: #{tpu_custom_call.1} parent=1 // pred_fallthru
      _
    // Predicated region
    $region14: #{tpu_custom_call.1} parent=1 // pred_check
      _
    $region15: #{tpu_custom_call.1} parent=1 // pred_check_branch
      %36 = sbr.rel (0) target = $region17
    $region16: #{tpu_custom_call.1} parent=1 // pred_region
      %37 = dma.done [#allocation3], 16
    $region17: #{tpu_custom_call.1} parent=1 // pred_fallthru
      _
    // Predicated region
    $region18: #{tpu_custom_call.1} parent=1 // pred_check
      _
    $region19: #{tpu_custom_call.1} parent=1 // pred_check_branch
      %39 = sbr.rel (0) target = $region21
    $region20: #{tpu_custom_call.1} parent=1 // pred_region
      %40 = dma.done [#allocation6], 256
    $region21: #{tpu_custom_call.1} parent=1 // pred_fallthru
      _
    %v42 = vld [vmem:[#allocation2] sm:$0x1]
    %v43 = vld [vmem:[#allocation5] sm:$0xf]
    %v44 = vld [vmem:[#allocation5 + $0x4] sm:$0xf]
    %v45 = vld [vmem:[#allocation5 + $0x8] sm:$0xf]
    %v46 = vld [vmem:[#allocation5 + $0xc] sm:$0xf]
    %v47 = vld [vmem:[%s2] sm:$0x1]
    %v49 = vlaneseq
    %v50 = vshrl.u32 %v49, 7
    %v51 = vsub.s32 0, %v50
    %v52 = vrot.slane %v47, %v51
    %v58 = vunpack.c.l.b16 %v43
    %v59 = vunpack.c.l.b16 %v44
    %v60 = vunpack.c.l.b16 %v45
    %v61 = vunpack.c.l.b16 %v46
    %v62 = vpack.c.b16 %v59, %v58
    %v63 = vpack.c.b16 %v61, %v60
    %vm66 = vcmask 261120
    %v68 = vsel %vm66, %v42, 0
    %70 = vmatprep.subr.bf16.mxu0 0
    %71 = vmatpush1.bf16.msra.mxu0 %v62
    %72 = vmatprep.subr.bf16.mxu0 0
    %73 = vmatpush1.bf16.msra.mxu0 %v63
    %74 = vmatprep.subr.bf16.mxu0 0
    %75 = vmatpush1.bf16.msra.mxu0 0
    %76 = vmatprep.subr.bf16.mxu0 0
    %77 = vmatpush1.bf16.msra.mxu0 0
    %78 = vmatprep.subr.bf16.mxu0 0
    %79 = vmatpush1.bf16.msra.mxu0 0
    %80 = vmatprep.subr.bf16.mxu0 0
    %81 = vmatpush1.bf16.msra.mxu0 0
    %82 = vmatprep.subr.bf16.mxu0 0
    %83 = vmatpush1.bf16.msra.mxu0 0
    %84 = vmatprep.subr.bf16.mxu0 0
    %85 = vmatpush1.bf16.msra.mxu0 0
    %86 = vmatprep.subr.bf16.mxu0 0
    %87 = vmatpush1.bf16.msra.mxu0 0
    %88 = vmatprep.subr.bf16.mxu0 0
    %89 = vmatpush1.bf16.msra.mxu0 0
    %90 = vmatprep.subr.bf16.mxu0 0
    %91 = vmatpush1.bf16.msra.mxu0 0
    %92 = vmatprep.subr.bf16.mxu0 0
    %93 = vmatpush1.bf16.msra.mxu0 0
    %94 = vmatprep.subr.bf16.mxu0 0
    %95 = vmatpush1.bf16.msra.mxu0 0
    %96 = vmatprep.subr.bf16.mxu0 0
    %97 = vmatpush1.bf16.msra.mxu0 0
    %98 = vmatprep.subr.bf16.mxu0 0
    %99 = vmatpush1.bf16.msra.mxu0 0
    %100 = vmatprep.subr.bf16.mxu0 0
    %101 = vmatpush1.bf16.msra.mxu0 0
    %102 = vmatprep.mubr.bf16.mxu0 0
    %103 = vmatmul.mubr.bf16.gmra.mrb[0].mxu0 %v68
    %v104 = vpop.f32.mrb[0].mxu0
    %v105 = vadd.f32 %v52, %v104
    %v106 = vpop.f32.mrb[0].mxu0
    %v107 = vpop.f32.mrb[0].mxu0
    %v108 = vpop.f32.mrb[0].mxu0
    %109 = vdwg.mxu0
    %vm110 = vcmask 975872
    %111 = vst.msk [vmem:[#allocation7] sm:$0x3] %vm110, %v105
    // Predicated region
    $region22: #{tpu_custom_call.1} parent=1 // pred_check
      _
    $region23: #{tpu_custom_call.1} parent=1 // pred_check_branch
      %113 = sbr.rel (0) target = $region25
    $region24: #{tpu_custom_call.1} parent=1 // pred_region
      %s115 = ssub.s32 32, 32
      %116 = vsyncadd [#allocation4], %s115
      %s118 = sshll.u32 [#allocation7], 4
      %s119 = int_to_ptr.vmem [resolvable:$true] %s118
      %121 = dma.vmem_to_hbm [thread:$0]  %s119, 32, %s3, [#allocation4]
    $region25: #{tpu_custom_call.1} parent=1 // pred_fallthru
      _
    // Predicated region
    $region26: #{tpu_custom_call.1} parent=1 // pred_check
      _
    $region27: #{tpu_custom_call.1} parent=1 // pred_check_branch
      %123 = sbr.rel (0) target = $region29
    $region28: #{tpu_custom_call.1} parent=1 // pred_region
      %124 = dma.done [#allocation4], 32
    $region29: #{tpu_custom_call.1} parent=1 // pred_fallthru
      _
    %125 = vsyncpa [#allocation3], 1
    %126 = vsyncpa [#allocation6], 1
    %127 = vsyncpa [#allocation4], 1

</llo_original>
